<compile_context>
chip_gen: v7x
topology: tpu7x:2x2x1
jax: 0.10.0
libtpu: 0.0.40
codegen_flags: <defaults>
</compile_context>

<pallas_src>
import functools

import jax
import jax.numpy as jnp
from jax.experimental import pallas as pl
from jax.experimental.pallas import tpu as pltpu


def _round_up(a, b):
    return ((a + b - 1) // b) * b


# ---------------------------------------------------------------------------
# Fused  (M, K) @ (K, N) + b -> activation   Pallas kernel (MXU, f32 accumulate).
# ---------------------------------------------------------------------------
def _matmul_bias_act_kernel(x_ref, w_ref, b_ref, o_ref, *, activation, cast_x):
    x = x_ref[...]
    w = w_ref[...]
    if cast_x:
        x = x.astype(w.dtype)              # bf16 MXU operands (v6e/v7x fast path)
    y = jnp.dot(x, w, preferred_element_type=jnp.float32)
    y = y + b_ref[...]                     # (tm, Np) + (1, Np) broadcast, f32
    if activation == "relu":
        y = jnp.maximum(y, 0.0)
    elif activation == "sigmoid":
        y = 1.0 / (1.0 + jnp.exp(-y))      # EUP exp + exact divide, f32
    o_ref[...] = y.astype(o_ref.dtype)


def matmul_bias_act(x, w, b, activation="none", *, use_bf16_operands=False):
    """x: (M, K) f32; w: (K, N) f32; b: (N,) f32 -> (M, N) f32."""
    M, K = x.shape
    Kw, N = w.shape
    assert Kw == K and b.shape == (N,)

    # Pad the contraction and output-lane dims to multiples of 128 so all in-kernel
    # vector loads/stores are unmasked and lane-dense (zero columns/rows contribute 0).
    Kp = _round_up(K, 128)
    Np = _round_up(N, 128)
    if Kp != K:
        x = jnp.pad(x, ((0, 0), (0, Kp - K)))
        w = jnp.pad(w, ((0, Kp - K), (0, 0)))
    if Np != N:
        w = jnp.pad(w, ((0, 0), (0, Np - N)))
        b = jnp.pad(b, ((0, Np - N),))

    if use_bf16_operands:
        w = w.astype(jnp.bfloat16)         # halves the dominant weight DMA (v6e/v7x)

    # Row tile: fill MXU rows (256 rows for v6e/v7x's 256x256 MXU; fine on v5e too),
    # keep it a multiple of 8 sublanes; pad M up to a whole number of tiles.
    tm = min(256, _round_up(M, 8))
    Mp = _round_up(M, tm)
    if Mp != M:
        x = jnp.pad(x, ((0, Mp - M), (0, 0)))
    grid = (Mp // tm,)

    x_bytes = x.dtype.itemsize
    w_bytes = w.dtype.itemsize
    # Scoped VMEM: double-buffered x/out tiles + resident weights/bias, 2x headroom,
    # capped so the request is always valid on v7x (64 MiB physical VMEM).
    vmem_needed = (2 * tm * Kp * x_bytes + 2 * Kp * Np * w_bytes
                   + 2 * tm * Np * 4 + 8 * Np * 4)
    vmem_limit = int(min(48 * 1024 * 1024, max(16 * 1024 * 1024, 2 * vmem_needed)))

    cost = pl.CostEstimate(
        flops=2 * Mp * Kp * Np + 2 * Mp * Np,
        bytes_accessed=Mp * Kp * x_bytes + Kp * Np * w_bytes + Np * 4 + Mp * Np * 4,
        transcendentals=Mp * Np if activation == "sigmoid" else 0,
    )

    out = pl.pallas_call(
        functools.partial(_matmul_bias_act_kernel,
                          activation=activation, cast_x=use_bf16_operands),
        out_shape=jax.ShapeDtypeStruct((Mp, Np), jnp.float32),
        grid=grid,
        in_specs=[
            pl.BlockSpec((tm, Kp), lambda i: (i, 0)),   # streamed patch-row tiles
            pl.BlockSpec((Kp, Np), lambda i: (0, 0)),   # weights resident in VMEM
            pl.BlockSpec((1, Np), lambda i: (0, 0)),    # bias resident in VMEM
        ],
        out_specs=pl.BlockSpec((tm, Np), lambda i: (i, 0)),
        compiler_params=pltpu.CompilerParams(
            dimension_semantics=("parallel",),          # megacore split on v7x
            vmem_limit_bytes=vmem_limit,
        ),
        cost_estimate=cost,
    )(x, w, b.reshape(1, Np))
    return out[:M, :N]


# ---------------------------------------------------------------------------
# Conv / ConvTranspose layers = JAX im2col glue + the fused Pallas matmul kernel.
# ---------------------------------------------------------------------------
def conv2d_s2(x_nhwc, w_pt, b, activation, *, use_bf16_operands=False):
    """Conv2d(kernel=4, stride=2, padding=1). w_pt: PyTorch layout (Cout, Cin, 4, 4)."""
    k, s, p = 4, 2, 1
    B, H, W, C = x_nhwc.shape
    Ho, Wo = (H + 2 * p - k) // s + 1, (W + 2 * p - k) // s + 1
    xp = jnp.pad(x_nhwc, ((0, 0), (p, p), (p, p), (0, 0)))
    cols = []
    for di in range(k):
        for dj in range(k):
            cols.append(xp[:, di:di + s * (Ho - 1) + 1:s, dj:dj + s * (Wo - 1) + 1:s, :])
    patches = jnp.concatenate(cols, axis=-1).reshape(B * Ho * Wo, k * k * C)
    w_mat = jnp.transpose(w_pt, (2, 3, 1, 0)).reshape(k * k * C, -1)   # (kh,kw,cin) x Cout
    y = matmul_bias_act(patches, w_mat, b, activation,
                        use_bf16_operands=use_bf16_operands)
    return y.reshape(B, Ho, Wo, -1)


def conv_transpose2d_s2(x_nhwc, w_pt, b, activation, *, use_bf16_operands=False):
    """ConvTranspose2d(kernel=4, stride=2, padding=1). w_pt: PyTorch layout (Cin, Cout, 4, 4)."""
    k, s, p = 4, 2, 1
    B, H, W, C = x_nhwc.shape
    Ho, Wo = s * H, s * W
    # stride-2 zero insertion (input dilation)
    xd = jnp.zeros((B, s * H - 1, s * W - 1, C), x_nhwc.dtype)
    xd = xd.at[:, ::s, ::s, :].set(x_nhwc)
    pad_eff = k - 1 - p                                                 # = 2
    xp = jnp.pad(xd, ((0, 0), (pad_eff, pad_eff), (pad_eff, pad_eff), (0, 0)))
    cols = []
    for di in range(k):
        for dj in range(k):
            cols.append(xp[:, di:di + Ho, dj:dj + Wo, :])
    patches = jnp.concatenate(cols, axis=-1).reshape(B * Ho * Wo, k * k * C)
    # equivalent forward-conv weight: channel-swap + 180-degree spatial flip
    w_conv = jnp.transpose(w_pt, (2, 3, 0, 1))[::-1, ::-1, :, :]        # (kh, kw, Cin, Cout)
    w_mat = w_conv.reshape(k * k * C, -1)
    y = matmul_bias_act(patches, w_mat, b, activation,
                        use_bf16_operands=use_bf16_operands)
    return y.reshape(B, Ho, Wo, -1)


def cae_forward(x_nchw, params, *, use_bf16_operands=False):
    """CAE.forward: returns (encoded, decoded), both NCHW like the PyTorch module."""
    kw = dict(use_bf16_operands=use_bf16_operands)
    x = jnp.transpose(x_nchw, (0, 2, 3, 1))                             # NCHW -> NHWC
    e = conv2d_s2(x, params["e1_w"], params["e1_b"], "relu", **kw)
    e = conv2d_s2(e, params["e2_w"], params["e2_b"], "relu", **kw)
    e = conv2d_s2(e, params["e3_w"], params["e3_b"], "relu", **kw)
    d = conv_transpose2d_s2(e, params["d1_w"], params["d1_b"], "relu", **kw)
    d = conv_transpose2d_s2(d, params["d2_w"], params["d2_b"], "relu", **kw)
    d = conv_transpose2d_s2(d, params["d3_w"], params["d3_b"], "sigmoid", **kw)
    encoded = jnp.transpose(e, (0, 3, 1, 2))                            # NHWC -> NCHW
    decoded = jnp.transpose(d, (0, 3, 1, 2))
    return encoded, decoded


# ---------------------------------------------------------------------------
# Pure-JAX reference (independent code path: XLA convolutions).
# ---------------------------------------------------------------------------
def _ref_conv(x, w_pt, b, act):
    w = jnp.transpose(w_pt, (2, 3, 1, 0))                               # OIHW -> HWIO
    y = jax.lax.conv_general_dilated(
        x, w, window_strides=(2, 2), padding=((1, 1), (1, 1)),
        dimension_numbers=("NHWC", "HWIO", "NHWC"),
        precision=jax.lax.Precision.HIGHEST) + b
    return jnp.maximum(y, 0.0) if act == "relu" else y


def _ref_convT(x, w_pt, b, act):
    w = jnp.transpose(w_pt, (2, 3, 0, 1))[::-1, ::-1, :, :]             # IOHW -> HWIO, flipped
    y = jax.lax.conv_general_dilated(
        x, w, window_strides=(1, 1), padding=((2, 2), (2, 2)), lhs_dilation=(2, 2),
        dimension_numbers=("NHWC", "HWIO", "NHWC"),
        precision=jax.lax.Precision.HIGHEST) + b
    if act == "relu":
        return jnp.maximum(y, 0.0)
    if act == "sigmoid":
        return jax.nn.sigmoid(y)
    return y


def cae_reference(x_nchw, params):
    x = jnp.transpose(x_nchw, (0, 2, 3, 1))
    e = _ref_conv(x, params["e1_w"], params["e1_b"], "relu")
    e = _ref_conv(e, params["e2_w"], params["e2_b"], "relu")
    e = _ref_conv(e, params["e3_w"], params["e3_b"], "relu")
    d = _ref_convT(e, params["d1_w"], params["d1_b"], "relu")
    d = _ref_convT(d, params["d2_w"], params["d2_b"], "relu")
    d = _ref_convT(d, params["d3_w"], params["d3_b"], "sigmoid")
    return jnp.transpose(e, (0, 3, 1, 2)), jnp.transpose(d, (0, 3, 1, 2))


if __name__ == "__main__":
    B, Cin, Hs, Ws = 2, 3, 16, 16
    key = jax.random.PRNGKey(0)
    keys = jax.random.split(key, 13)

    def uni(k, shape, fan_in):
        s = 1.0 / jnp.sqrt(jnp.float32(fan_in))
        return jax.random.uniform(k, shape, jnp.float32, minval=-1.0, maxval=1.0) * s

    params = {
        # encoder Conv2d weights: (Cout, Cin, 4, 4)
        "e1_w": uni(keys[0], (64, 3, 4, 4), 3 * 16),   "e1_b": uni(keys[1], (64,), 3 * 16),
        "e2_w": uni(keys[2], (128, 64, 4, 4), 64 * 16), "e2_b": uni(keys[3], (128,), 64 * 16),
        "e3_w": uni(keys[4], (256, 128, 4, 4), 128 * 16), "e3_b": uni(keys[5], (256,), 128 * 16),
        # decoder ConvTranspose2d weights: (Cin, Cout, 4, 4)
        "d1_w": uni(keys[6], (256, 128, 4, 4), 256 * 16), "d1_b": uni(keys[7], (128,), 256 * 16),
        "d2_w": uni(keys[8], (128, 64, 4, 4), 128 * 16),  "d2_b": uni(keys[9], (64,), 128 * 16),
        "d3_w": uni(keys[10], (64, 3, 4, 4), 64 * 16),    "d3_b": uni(keys[11], (3,), 64 * 16),
    }

    x = jax.random.normal(keys[12], (B, Cin, Hs, Ws), dtype=jnp.float32)

    encoded, decoded = cae_forward(x, params)          # f32 path (bf16 knob off for checking)
    encoded = jax.block_until_ready(encoded)
    decoded = jax.block_until_ready(decoded)

    enc_ref, dec_ref = cae_reference(x, params)

    assert encoded.shape == (B, 256, Hs // 8, Ws // 8)
    assert decoded.shape == (B, 3, Hs, Ws)
    assert jnp.allclose(encoded, enc_ref, atol=1e-3, rtol=1e-3)
    assert jnp.allclose(decoded, dec_ref, atol=1e-3, rtol=1e-3)
    assert bool(jnp.all(decoded >= 0.0)) and bool(jnp.all(decoded <= 1.0))   # sigmoid range

    print("KERNEL_OK")
</pallas_src>

<mosaic_0001>
module attributes {stable_mosaic.version = 11 : i64} {
  func.func @_matmul_bias_act_kernel(%arg0: i32, %arg1: memref<128x128xf32, #tpu.memory_space<vmem>>, %arg2: memref<128x128xf32, #tpu.memory_space<vmem>>, %arg3: memref<1x128xf32, #tpu.memory_space<vmem>>, %arg4: memref<128x128xf32, #tpu.memory_space<vmem>>) attributes {dimension_semantics = [#tpu.dimension_semantics<parallel>], iteration_bounds = array<i64: 1>, scalar_prefetch = 0 : i64, scratch_operands = 0 : i64, tpu.core_type = #tpu.core_type<tc>, window_params = [{transform_indices = @transform_0, window_bounds = array<i64: 128, 128>}, {pipeline_mode = #tpu.pipeline_mode<synchronous>, transform_indices = @transform_1, window_bounds = array<i64: 128, 128>}, {pipeline_mode = #tpu.pipeline_mode<synchronous>, transform_indices = @transform_2, window_bounds = array<i64: 1, 128>}, {transform_indices = @transform_3, window_bounds = array<i64: 128, 128>}]} {
    %c0 = arith.constant 0 : index
    %c0_0 = arith.constant 0 : index
    %0 = vector.load %arg1[%c0, %c0_0] : memref<128x128xf32, #tpu.memory_space<vmem>>, vector<128x128xf32>
    %c0_1 = arith.constant 0 : index
    %c0_2 = arith.constant 0 : index
    %1 = vector.load %arg2[%c0_1, %c0_2] : memref<128x128xf32, #tpu.memory_space<vmem>>, vector<128x128xf32>
    %cst = arith.constant dense<0.000000e+00> : vector<128x128xf32>
    %2 = tpu.matmul %0, %1, %cst {dimension_numbers = #tpu.dot_dimension_numbers<[1], [0], [0], [1], [0, 0, 1, 1], [], []>} : vector<128x128xf32>, vector<128x128xf32>, vector<128x128xf32> -> vector<128x128xf32>
    %c0_3 = arith.constant 0 : index
    %c0_4 = arith.constant 0 : index
    %3 = vector.load %arg3[%c0_3, %c0_4] : memref<1x128xf32, #tpu.memory_space<vmem>>, vector<1x128xf32>
    %4 = vector.broadcast %3 : vector<1x128xf32> to vector<128x128xf32>
    %5 = arith.addf %2, %4 : vector<128x128xf32>
    %cst_5 = arith.constant 0.000000e+00 : f32
    %6 = vector.broadcast %cst_5 : f32 to vector<128x128xf32>
    %7 = arith.maximumf %5, %6 : vector<128x128xf32>
    %c0_6 = arith.constant 0 : index
    %c0_7 = arith.constant 0 : index
    %8 = vector.load %arg4[%c0_6, %c0_7] : memref<128x128xf32, #tpu.memory_space<vmem>>, vector<128x128xf32>
    tpu.vector_store %arg4[%c0_6, %c0_7], %7 {strides = array<i32>} : memref<128x128xf32, #tpu.memory_space<vmem>>, vector<128x128xf32>,
    return
  }
  func.func @transform_0(%arg0: i32) -> (i32, i32) {
    %c0_i32 = arith.constant 0 : i32
    %c0_i32_0 = arith.constant 0 : i32
    return %arg0, %c0_i32 : i32, i32
  }
  func.func @transform_1(%arg0: i32) -> (i32, i32) {
    %c0_i32 = arith.constant 0 : i32
    %c0_i32_0 = arith.constant 0 : i32
    %c0_i32_1 = arith.constant 0 : i32
    return %c0_i32, %c0_i32_0 : i32, i32
  }
  func.func @transform_2(%arg0: i32) -> (i32, i32) {
    %c0_i32 = arith.constant 0 : i32
    %c0_i32_0 = arith.constant 0 : i32
    %c0_i32_1 = arith.constant 0 : i32
    return %c0_i32, %c0_i32_0 : i32, i32
  }
  func.func @transform_3(%arg0: i32) -> (i32, i32) {
    %c0_i32 = arith.constant 0 : i32
    %c0_i32_0 = arith.constant 0 : i32
    return %arg0, %c0_i32 : i32, i32
  }
}

</mosaic_0001>

<llo_original>
// kernel: tpu_custom_call.1
$region0: #{tpu_custom_call.1}
  #allocation0 [shape = 'u32[]', space=smem, size = 0x4, offset = 0x4, fixed_abs, tag = 'smem constant byte address 0x4 - core index']
  #allocation1 [shape = 'u32[144,128]{1,0:T(1,128)}', space=vmem, size = 0x12000, scoped, tag = 'internal scratch']
  %s0 = inlined_call_operand.hbm [shape: f32[128,128], index: 0, kind: input, shape index: {}]
  %s1 = inlined_call_operand.hbm [shape: f32[128,128], index: 1, kind: input, shape index: {}]
  %s2 = inlined_call_operand.vmem [shape: f32[1,128], index: 2, kind: input, shape index: {}]
  %s3 = inlined_call_operand.hbm [shape: f32[128,128], index: 3, kind: output, shape index: {}]
  %s4 = sld [smem:[#allocation0]]
  $region30: #{tpu_custom_call.1} parent=0
    _
  %s6 = ssub.s32 1, %s4
  %s7 = scalar_select 0, %s6, %s4
  $region1: #{tpu_custom_call.1} parent=0
    #allocation2 [shape = 'u8[65536]{0}', space=vmem, size = 0x10000, scoped, tag = 'input window, operand 0, single buffered']
    #allocation3 [shape = 's32[1]{0}', space=sflag, size = 0x4, scoped, tag = 'scoped memory for tpu_custom_call.1']
    #allocation4 [shape = 's32[1]{0}', space=sflag, size = 0x4, scoped, tag = 'scoped memory for tpu_custom_call.1']
    #allocation5 [shape = 'u8[65536]{0}', space=vmem, size = 0x10000, scoped, tag = 'input window, operand 1, single buffered']
    #allocation6 [shape = 's32[1]{0}', space=sflag, size = 0x4, scoped, tag = 'scoped memory for tpu_custom_call.1']
    #allocation7 [shape = 'u8[65536]{0}', space=vmem, size = 0x10000, scoped, tag = 'output window, operand 0, single buffered']
    %8 = vsyncpa [#allocation3], 0
    %9 = vsyncpa [#allocation6], 0
    %10 = vsyncpa [#allocation4], 0
    // Predicated region
    $region2: #{tpu_custom_call.1} parent=1 // pred_check
      _
    $region3: #{tpu_custom_call.1} parent=1 // pred_check_branch
      %12 = sbr.rel (0) target = $region5
    $region4: #{tpu_custom_call.1} parent=1 // pred_region
      %s14 = ssub.s32 2048, 2048
      %15 = vsyncadd [#allocation3], %s14
      %s16 = sshll.u32 [#allocation2], 4
      %s17 = int_to_ptr.vmem [resolvable:$true] %s16
      %22 = dma.hbm_to_vmem [thread:$0]  %s0, 2048, %s17, [#allocation3], 128, 128, 8
    $region5: #{tpu_custom_call.1} parent=1 // pred_fallthru
      _
    // Predicated region
    $region6: #{tpu_custom_call.1} parent=1 // pred_check
      _
    $region7: #{tpu_custom_call.1} parent=1 // pred_check_branch
      %24 = sbr.rel (0) target = $region9
    $region8: #{tpu_custom_call.1} parent=1 // pred_region
      %s26 = ssub.s32 2048, 2048
      %27 = vsyncadd [#allocation6], %s26
      %s28 = sshll.u32 [#allocation5], 4
      %s29 = int_to_ptr.vmem [resolvable:$true] %s28
      %34 = dma.hbm_to_vmem [thread:$0]  %s1, 2048, %s29, [#allocation6], 128, 128, 8
    $region9: #{tpu_custom_call.1} parent=1 // pred_fallthru
      _
    // Predicated region
    $region10: #{tpu_custom_call.1} parent=1 // pred_check
      _
    $region11: #{tpu_custom_call.1} parent=1 // pred_check_branch
      %36 = sbr.rel (0) target = $region13
    $region12: #{tpu_custom_call.1} parent=1 // pred_region
      _
    $region13: #{tpu_custom_call.1} parent=1 // pred_fallthru
      _
    // Predicated region
    $region14: #{tpu_custom_call.1} parent=1 // pred_check
      _
    $region15: #{tpu_custom_call.1} parent=1 // pred_check_branch
      %38 = sbr.rel (0) target = $region17
    $region16: #{tpu_custom_call.1} parent=1 // pred_region
      %39 = dma.done [#allocation3], 2048
    $region17: #{tpu_custom_call.1} parent=1 // pred_fallthru
      _
    // Predicated region
    $region18: #{tpu_custom_call.1} parent=1 // pred_check
      _
    $region19: #{tpu_custom_call.1} parent=1 // pred_check_branch
      %41 = sbr.rel (0) target = $region21
    $region20: #{tpu_custom_call.1} parent=1 // pred_region
      %42 = dma.done [#allocation6], 2048
    $region21: #{tpu_custom_call.1} parent=1 // pred_fallthru
      _
    %v43 = vld [vmem:[#allocation2] sm:$0xff]
    %v44 = vld [vmem:[#allocation2 + $0x8] sm:$0xff]
    %v45 = vld [vmem:[#allocation2 + $0x10] sm:$0xff]
    %v46 = vld [vmem:[#allocation2 + $0x18] sm:$0xff]
    %v47 = vld [vmem:[#allocation2 + $0x20] sm:$0xff]
    %v48 = vld [vmem:[#allocation2 + $0x28] sm:$0xff]
    %v49 = vld [vmem:[#allocation2 + $0x30] sm:$0xff]
    %v50 = vld [vmem:[#allocation2 + $0x38] sm:$0xff]
    %v51 = vld [vmem:[#allocation2 + $0x40] sm:$0xff]
    %v52 = vld [vmem:[#allocation2 + $0x48] sm:$0xff]
    %v53 = vld [vmem:[#allocation2 + $0x50] sm:$0xff]
    %v54 = vld [vmem:[#allocation2 + $0x58] sm:$0xff]
    %v55 = vld [vmem:[#allocation2 + $0x60] sm:$0xff]
    %v56 = vld [vmem:[#allocation2 + $0x68] sm:$0xff]
    %v57 = vld [vmem:[#allocation2 + $0x70] sm:$0xff]
    %v58 = vld [vmem:[#allocation2 + $0x78] sm:$0xff]
    %v59 = vld [vmem:[#allocation5] sm:$0xff]
    %v60 = vld [vmem:[#allocation5 + $0x8] sm:$0xff]
    %v61 = vld [vmem:[#allocation5 + $0x10] sm:$0xff]
    %v62 = vld [vmem:[#allocation5 + $0x18] sm:$0xff]
    %v63 = vld [vmem:[#allocation5 + $0x20] sm:$0xff]
    %v64 = vld [vmem:[#allocation5 + $0x28] sm:$0xff]
    %v65 = vld [vmem:[#allocation5 + $0x30] sm:$0xff]
    %v66 = vld [vmem:[#allocation5 + $0x38] sm:$0xff]
    %v67 = vld [vmem:[#allocation5 + $0x40] sm:$0xff]
    %v68 = vld [vmem:[#allocation5 + $0x48] sm:$0xff]
    %v69 = vld [vmem:[#allocation5 + $0x50] sm:$0xff]
    %v70 = vld [vmem:[#allocation5 + $0x58] sm:$0xff]
    %v71 = vld [vmem:[#allocation5 + $0x60] sm:$0xff]
    %v72 = vld [vmem:[#allocation5 + $0x68] sm:$0xff]
    %v73 = vld [vmem:[#allocation5 + $0x70] sm:$0xff]
    %v74 = vld [vmem:[#allocation5 + $0x78] sm:$0xff]
    %v75 = vld [vmem:[%s2] sm:$0x1]
    %v77 = vlaneseq
    %v78 = vshrl.u32 %v77, 7
    %v79 = vsub.s32 0, %v78
    %v80 = vrot.slane %v75, %v79
    %82 = vmatprep.subr.mxu0 0.0
    %83 = vmatpush1.msra.mxu0 %v59
    %84 = vmatprep.subr.mxu0 0.0
    %85 = vmatpush1.msra.mxu0 %v60
    %86 = vmatprep.subr.mxu0 0.0
    %87 = vmatpush1.msra.mxu0 %v61
    %88 = vmatprep.subr.mxu0 0.0
    %89 = vmatpush1.msra.mxu0 %v62
    %90 = vmatprep.subr.mxu0 0.0
    %91 = vmatpush1.msra.mxu0 %v63
    %92 = vmatprep.subr.mxu0 0.0
    %93 = vmatpush1.msra.mxu0 %v64
    %94 = vmatprep.subr.mxu0 0.0
    %95 = vmatpush1.msra.mxu0 %v65
    %96 = vmatprep.subr.mxu0 0.0
    %97 = vmatpush1.msra.mxu0 %v66
    %98 = vmatprep.subr.mxu0 0.0
    %99 = vmatpush1.msra.mxu0 %v67
    %100 = vmatprep.subr.mxu0 0.0
    %101 = vmatpush1.msra.mxu0 %v68
    %102 = vmatprep.subr.mxu0 0.0
    %103 = vmatpush1.msra.mxu0 %v69
    %104 = vmatprep.subr.mxu0 0.0
    %105 = vmatpush1.msra.mxu0 %v70
    %106 = vmatprep.subr.mxu0 0.0
    %107 = vmatpush1.msra.mxu0 %v71
    %108 = vmatprep.subr.mxu0 0.0
    %109 = vmatpush1.msra.mxu0 %v72
    %110 = vmatprep.subr.mxu0 0.0
    %111 = vmatpush1.msra.mxu0 %v73
    %112 = vmatprep.subr.mxu0 0.0
    %113 = vmatpush1.msra.mxu0 %v74
    %114 = vmatprep.subr.mxu0 0.0
    %115 = vmatpush1.msra.mxu0 0.0
    %116 = vmatprep.subr.mxu0 0.0
    %117 = vmatpush1.msra.mxu0 0.0
    %118 = vmatprep.subr.mxu0 0.0
    %119 = vmatpush1.msra.mxu0 0.0
    %120 = vmatprep.subr.mxu0 0.0
    %121 = vmatpush1.msra.mxu0 0.0
    %122 = vmatprep.subr.mxu0 0.0
    %123 = vmatpush1.msra.mxu0 0.0
    %124 = vmatprep.subr.mxu0 0.0
    %125 = vmatpush1.msra.mxu0 0.0
    %126 = vmatprep.subr.mxu0 0.0
    %127 = vmatpush1.msra.mxu0 0.0
    %128 = vmatprep.subr.mxu0 0.0
    %129 = vmatpush1.msra.mxu0 0.0
    %130 = vmatprep.subr.mxu0 0.0
    %131 = vmatpush1.msra.mxu0 0.0
    %132 = vmatprep.subr.mxu0 0.0
    %133 = vmatpush1.msra.mxu0 0.0
    %134 = vmatprep.subr.mxu0 0.0
    %135 = vmatpush1.msra.mxu0 0.0
    %136 = vmatprep.subr.mxu0 0.0
    %137 = vmatpush1.msra.mxu0 0.0
    %138 = vmatprep.subr.mxu0 0.0
    %139 = vmatpush1.msra.mxu0 0.0
    %140 = vmatprep.subr.mxu0 0.0
    %141 = vmatpush1.msra.mxu0 0.0
    %142 = vmatprep.subr.mxu0 0.0
    %143 = vmatpush1.msra.mxu0 0.0
    %144 = vmatprep.subr.mxu0 0.0
    %145 = vmatpush1.msra.mxu0 0.0
    %146 = vmatprep.mubr.f32.mxu0 0.0
    %147 = vmatmul.mubr.f32.gmra.mrb[0].mxu0 %v43
    %v148 = vpop.f32.mrb[0].mxu0
    %v149 = vadd.f32 %v80, %v148
    %v150 = vpop.f32.mrb[0].mxu0
    %151 = vmatprep.mubr.f32.mxu0 0.0
    %152 = vmatmul.mubr.f32.gmra.mrb[0].mxu0 %v44
    %v153 = vpop.f32.mrb[0].mxu0
    %v154 = vadd.f32 %v80, %v153
    %v155 = vpop.f32.mrb[0].mxu0
    %156 = vmatprep.mubr.f32.mxu0 0.0
    %157 = vmatmul.mubr.f32.gmra.mrb[0].mxu0 %v45
    %v158 = vpop.f32.mrb[0].mxu0
    %v159 = vadd.f32 %v80, %v158
    %v160 = vpop.f32.mrb[0].mxu0
    %161 = vmatprep.mubr.f32.mxu0 0.0
    %162 = vmatmul.mubr.f32.gmra.mrb[0].mxu0 %v46
    %v163 = vpop.f32.mrb[0].mxu0
    %v164 = vadd.f32 %v80, %v163
    %v165 = vpop.f32.mrb[0].mxu0
    %166 = vmatprep.mubr.f32.mxu0 0.0
    %167 = vmatmul.mubr.f32.gmra.mrb[0].mxu0 %v47
    %v168 = vpop.f32.mrb[0].mxu0
    %v169 = vadd.f32 %v80, %v168
    %v170 = vpop.f32.mrb[0].mxu0
    %171 = vmatprep.mubr.f32.mxu0 0.0
    %172 = vmatmul.mubr.f32.gmra.mrb[0].mxu0 %v48
    %v173 = vpop.f32.mrb[0].mxu0
    %v174 = vadd.f32 %v80, %v173
    %v175 = vpop.f32.mrb[0].mxu0
    %176 = vmatprep.mubr.f32.mxu0 0.0
    %177 = vmatmul.mubr.f32.gmra.mrb[0].mxu0 %v49
    %v178 = vpop.f32.mrb[0].mxu0
    %v179 = vadd.f32 %v80, %v178
    %v180 = vpop.f32.mrb[0].mxu0
    %181 = vmatprep.mubr.f32.mxu0 0.0
    %182 = vmatmul.mubr.f32.gmra.mrb[0].mxu0 %v50
    %v183 = vpop.f32.mrb[0].mxu0
    %v184 = vadd.f32 %v80, %v183
    %v185 = vpop.f32.mrb[0].mxu0
    %186 = vmatprep.mubr.f32.mxu0 0.0
    %187 = vmatmul.mubr.f32.gmra.mrb[0].mxu0 %v51
    %v188 = vpop.f32.mrb[0].mxu0
    %v189 = vadd.f32 %v80, %v188
    %v190 = vpop.f32.mrb[0].mxu0
    %191 = vmatprep.mubr.f32.mxu0 0.0
    %192 = vmatmul.mubr.f32.gmra.mrb[0].mxu0 %v52
    %v193 = vpop.f32.mrb[0].mxu0
    %v194 = vadd.f32 %v80, %v193
    %v195 = vpop.f32.mrb[0].mxu0
    %196 = vmatprep.mubr.f32.mxu0 0.0
    %197 = vmatmul.mubr.f32.gmra.mrb[0].mxu0 %v53
    %v198 = vpop.f32.mrb[0].mxu0
    %v199 = vadd.f32 %v80, %v198
    %v200 = vpop.f32.mrb[0].mxu0
    %201 = vmatprep.mubr.f32.mxu0 0.0
    %202 = vmatmul.mubr.f32.gmra.mrb[0].mxu0 %v54
    %v203 = vpop.f32.mrb[0].mxu0
    %v204 = vadd.f32 %v80, %v203
    %v205 = vpop.f32.mrb[0].mxu0
    %206 = vmatprep.mubr.f32.mxu0 0.0
    %207 = vmatmul.mubr.f32.gmra.mrb[0].mxu0 %v55
    %v208 = vpop.f32.mrb[0].mxu0
    %v209 = vadd.f32 %v80, %v208
    %v210 = vpop.f32.mrb[0].mxu0
    %211 = vmatprep.mubr.f32.mxu0 0.0
    %212 = vmatmul.mubr.f32.gmra.mrb[0].mxu0 %v56
    %v213 = vpop.f32.mrb[0].mxu0
    %v214 = vadd.f32 %v80, %v213
    %v215 = vpop.f32.mrb[0].mxu0
    %216 = vmatprep.mubr.f32.mxu0 0.0
    %217 = vmatmul.mubr.f32.gmra.mrb[0].mxu0 %v57
    %v218 = vpop.f32.mrb[0].mxu0
    %v219 = vadd.f32 %v80, %v218
    %v220 = vpop.f32.mrb[0].mxu0
    %221 = vmatprep.mubr.f32.mxu0 0.0
    %222 = vmatmul.mubr.f32.gmra.mrb[0].mxu0 %v58
    %v223 = vpop.f32.mrb[0].mxu0
    %v224 = vadd.f32 %v80, %v223
    %v225 = vpop.f32.mrb[0].mxu0
    %226 = vdwg.mxu0
    %v227 = vmax.f32 %v149, 0.0
    %v228 = vmax.f32 %v154, 0.0
    %v229 = vmax.f32 %v159, 0.0
    %v230 = vmax.f32 %v164, 0.0
    %v231 = vmax.f32 %v169, 0.0
    %v232 = vmax.f32 %v174, 0.0
    %v233 = vmax.f32 %v179, 0.0
    %v234 = vmax.f32 %v184, 0.0
    %v235 = vmax.f32 %v189, 0.0
    %v236 = vmax.f32 %v194, 0.0
    %v237 = vmax.f32 %v199, 0.0
    %v238 = vmax.f32 %v204, 0.0
    %v239 = vmax.f32 %v209, 0.0
    %v240 = vmax.f32 %v214, 0.0
    %v241 = vmax.f32 %v219, 0.0
    %v242 = vmax.f32 %v224, 0.0
    %243 = vst [vmem:[#allocation7] sm:$0xff] %v227
    %244 = vst [vmem:[#allocation7 + $0x8] sm:$0xff] %v228
    %245 = vst [vmem:[#allocation7 + $0x10] sm:$0xff] %v229
    %246 = vst [vmem:[#allocation7 + $0x18] sm:$0xff] %v230
    %247 = vst [vmem:[#allocation7 + $0x20] sm:$0xff] %v231
    %248 = vst [vmem:[#allocation7 + $0x28] sm:$0xff] %v232
    %249 = vst [vmem:[#allocation7 + $0x30] sm:$0xff] %v233
    %250 = vst [vmem:[#allocation7 + $0x38] sm:$0xff] %v234
    %251 = vst [vmem:[#allocation7 + $0x40] sm:$0xff] %v235
    %252 = vst [vmem:[#allocation7 + $0x48] sm:$0xff] %v236
    %253 = vst [vmem:[#allocation7 + $0x50] sm:$0xff] %v237
    %254 = vst [vmem:[#allocation7 + $0x58] sm:$0xff] %v238
    %255 = vst [vmem:[#allocation7 + $0x60] sm:$0xff] %v239
    %256 = vst [vmem:[#allocation7 + $0x68] sm:$0xff] %v240
    %257 = vst [vmem:[#allocation7 + $0x70] sm:$0xff] %v241
    %258 = vst [vmem:[#allocation7 + $0x78] sm:$0xff] %v242
    // Predicated region
    $region22: #{tpu_custom_call.1} parent=1 // pred_check
      _
    $region23: #{tpu_custom_call.1} parent=1 // pred_check_branch
      %260 = sbr.rel (0) target = $region25
    $region24: #{tpu_custom_call.1} parent=1 // pred_region
      %s262 = ssub.s32 2048, 2048
      %263 = vsyncadd [#allocation4], %s262
      %s264 = sshll.u32 [#allocation7], 4
      %s265 = int_to_ptr.vmem [resolvable:$true] %s264
      %270 = dma.vmem_to_hbm [thread:$0]  %s265, 2048, %s3, [#allocation4], 128, 128, 8
    $region25: #{tpu_custom_call.1} parent=1 // pred_fallthru
      _
    // Predicated region
    $region26: #{tpu_custom_call.1} parent=1 // pred_check
      _
    $region27: #{tpu_custom_call.1} parent=1 // pred_check_branch
      %272 = sbr.rel (0) target = $region29
    $region28: #{tpu_custom_call.1} parent=1 // pred_region
      %273 = dma.done [#allocation4], 2048
    $region29: #{tpu_custom_call.1} parent=1 // pred_fallthru
      _
    %274 = vsyncpa [#allocation3], 1
    %275 = vsyncpa [#allocation6], 1
    %276 = vsyncpa [#allocation4], 1

</llo_original>
